<compile_context>
chip_gen: v7x
topology: tpu7x:2x2x1
jax: 0.10.0
libtpu: 0.0.40
codegen_flags: <defaults>
</compile_context>

<pallas_src>
import functools
import math

import jax
import jax.numpy as jnp
from jax.experimental import pallas as pl
from jax.experimental.pallas import tpu as pltpu


def channel_attention_kernel(w_ref, x_ref, o_ref, *, c_r, use_mxu, reuse_block):
    # w_ref: VMEM f32[C, 2*C_r]  fused weights: [:, :C_r] = fc[0].weight.T,
    #                                            [:, C_r:] = fc[2].weight
    # x_ref: VMEM [NB, C, HW]    NB batch elements, H*W flattened (lane-dense)
    # o_ref: VMEM [NB, C, HW]
    xb = x_ref[...].astype(jnp.float32)                     # (NB, C, HW)

    # Global spatial pooling -> per-(batch, channel) descriptors (lane reduce).
    avg_v = jnp.mean(xb, axis=2)                            # (NB, C)
    max_v = jnp.max(xb, axis=2)                             # (NB, C)

    w1t = w_ref[:, :c_r].astype(jnp.float32)                # (C, C_r)
    w2 = w_ref[:, c_r:].astype(jnp.float32)                 # (C, C_r)

    # Shared MLP. The second conv is linear (no bias in the module), so
    # fc(avg) + fc(max) = w2 @ (relu(w1 @ avg) + relu(w1 @ max)).
    if use_mxu:
        # Production channel counts: keep VPU/XLU free for the memory path,
        # run the tiny MLP on the otherwise-idle MXU with f32 accumulation.
        h_avg = jnp.maximum(
            jnp.dot(avg_v, w1t, preferred_element_type=jnp.float32), 0.0)
        h_max = jnp.maximum(
            jnp.dot(max_v, w1t, preferred_element_type=jnp.float32), 0.0)
        z = jax.lax.dot_general(
            h_avg + h_max, w2,
            dimension_numbers=(((1,), (1,)), ((), ())),
            preferred_element_type=jnp.float32)              # (NB, C)
    else:
        # Small C / C_r (test shapes): exact f32 broadcast-multiply + reduce.
        h_avg = jnp.maximum(jnp.sum(w1t[None] * avg_v[:, :, None], axis=1), 0.0)
        h_max = jnp.maximum(jnp.sum(w1t[None] * max_v[:, :, None], axis=1), 0.0)
        z = jnp.sum(w2[None] * (h_avg + h_max)[:, None, :], axis=2)  # (NB, C)

    attn = jax.nn.sigmoid(z)                                 # (NB, C)

    if reuse_block:
        # Block is small enough to stay live in vregs: no second read/cast.
        o_ref[...] = (xb * attn[:, :, None]).astype(o_ref.dtype)
    else:
        # Large block: re-read the VMEM ref so its live range stays bounded.
        o_ref[...] = (x_ref[...].astype(jnp.float32)
                      * attn[:, :, None]).astype(o_ref.dtype)


def _vmem_capacity_bytes() -> int:
    """Per-core physical VMEM (v5e/v6e 128 MiB, v7x 64 MiB); conservative fallback."""
    try:
        info = pltpu.get_tpu_info()
        for name in ("vmem_capacity_bytes", "vmem_bytes", "vmem_size_bytes"):
            v = getattr(info, name, None)
            if v:
                return int(v)
    except Exception:
        pass
    return 64 << 20


def channel_attention(x, w1, w2):
    """x: (N, C, H, W); w1: (C_r, C) = fc[0].weight; w2: (C, C_r) = fc[2].weight."""
    N, C, H, W = x.shape
    HW = H * W
    C_r = w1.shape[0]
    assert w1.shape == (C_r, C) and w2.shape == (C, C_r)

    x2 = x.reshape(N, C, HW)                       # lane-dense view
    # One fused resident weight block: [w1.T | w2] -> a single tiny DMA.
    w_fused = jnp.concatenate([w1.T.astype(jnp.float32),
                               w2.astype(jnp.float32)], axis=1)   # (C, 2*C_r)

    elt = jnp.dtype(x.dtype).itemsize
    per_batch = C * HW * elt                       # bytes of one (C, HW) slab
    w_bytes = C * 2 * C_r * 4

    vmem_cap = _vmem_capacity_bytes()
    vmem_budget = int(vmem_cap * 0.8)              # ~51 MiB v7x, ~102 MiB v5e/v6e
    headroom = 2 << 20

    # Batches per grid step: target a multi-MiB block to amortize per-step
    # overhead, keep grid length >= 2 when possible (megacore), and keep the
    # double-buffered 2x(in)+2x(out) blocks inside the per-chip VMEM budget.
    target_block = 8 << 20
    nb = max(1, min(N, target_block // per_batch))
    if N >= 2:
        nb = min(nb, max(1, N // 2))
    max_nb_vmem = max(1, (vmem_budget - 2 * w_bytes - headroom) // (4 * per_batch))
    nb = int(max(1, min(nb, max_nb_vmem)))
    grid_n = pl.cdiv(N, nb)
    # Note: if N % nb != 0 the edge block is padded/clamped by Pallas; every
    # row's computation is independent, so padded rows never affect valid output.

    vmem_limit = int(min(max(4 * nb * per_batch + 2 * w_bytes + headroom, 4 << 20),
                         vmem_budget))

    use_mxu = (C >= 128 and C_r >= 8)
    reuse_block = (nb * C * HW * 4) <= (32 * 4096)   # block fits ~32 f32 vregs

    kernel = functools.partial(channel_attention_kernel,
                               c_r=C_r, use_mxu=use_mxu, reuse_block=reuse_block)

    out = pl.pallas_call(
        kernel,
        out_shape=jax.ShapeDtypeStruct((N, C, HW), x.dtype),
        grid=(grid_n,),
        in_specs=[
            pl.BlockSpec((C, 2 * C_r), lambda b: (0, 0)),     # fused weights (resident)
            pl.BlockSpec((nb, C, HW), lambda b: (b, 0, 0)),   # x block
        ],
        out_specs=pl.BlockSpec((nb, C, HW), lambda b: (b, 0, 0)),
        compiler_params=pltpu.CompilerParams(
            dimension_semantics=("parallel",),
            vmem_limit_bytes=vmem_limit,
        ),
    )(w_fused, x2)
    return out.reshape(N, C, H, W)
    # TODO(synk): for feature maps whose single (nb=1) block exceeds the VMEM
    # budget (huge C*HW), add an HW-tiled two-phase (pool-then-scale) fallback.


def reference(x, w1, w2):
    """Pure-JAX reference mirroring the PyTorch forward (exact f32)."""
    avg = jnp.mean(x, axis=(2, 3))                         # (N, C)
    mx = jnp.max(x, axis=(2, 3))                           # (N, C)

    def fc(v):                                             # (N, C) -> (N, C)
        h = jnp.maximum(jnp.sum(w1[None] * v[:, None, :], axis=-1), 0.0)  # (N, C_r)
        return jnp.sum(w2[None] * h[:, None, :], axis=-1)                  # (N, C)

    attn = jax.nn.sigmoid(fc(avg) + fc(mx))                # (N, C)
    return x * attn[:, :, None, None]


if __name__ == "__main__":
    key = jax.random.PRNGKey(0)
    kx, k1, k2 = jax.random.split(key, 3)

    # channels must be >= reduction so channels // reduction >= 1.
    N, C, H, W = 2, 64, 16, 16
    reduction = 16
    C_r = C // reduction

    x = jax.random.normal(kx, (N, C, H, W), dtype=jnp.float32)

    # Deterministic init matching PyTorch Conv2d default (kaiming_uniform,
    # a=sqrt(5)): bound = 1/sqrt(fan_in), fan_in = in_channels * 1 * 1.
    b1 = 1.0 / math.sqrt(C)
    b2 = 1.0 / math.sqrt(C_r)
    w1 = jax.random.uniform(k1, (C_r, C), jnp.float32, -b1, b1)   # fc[0].weight
    w2 = jax.random.uniform(k2, (C, C_r), jnp.float32, -b2, b2)   # fc[2].weight

    out = channel_attention(x, w1, w2)
    jax.block_until_ready(out)

    ref = reference(x, w1, w2)
    err = float(jnp.max(jnp.abs(out - ref)))
    assert out.shape == (N, C, H, W)
    assert err < 1e-4, f"mismatch vs reference, max abs err = {err}"
    print("KERNEL_OK")
</pallas_src>

<mosaic_0001>
module attributes {stable_mosaic.version = 11 : i64} {
  func.func @channel_attention_kernel(%arg0: i32, %arg1: memref<64x8xf32, #tpu.memory_space<vmem>>, %arg2: memref<1x64x256xf32, #tpu.memory_space<vmem>>, %arg3: memref<1x64x256xf32, #tpu.memory_space<vmem>>) attributes {dimension_semantics = [#tpu.dimension_semantics<parallel>], iteration_bounds = array<i64: 2>, scalar_prefetch = 0 : i64, scratch_operands = 0 : i64, tpu.core_type = #tpu.core_type<tc>, window_params = [{pipeline_mode = #tpu.pipeline_mode<synchronous>, transform_indices = @transform_0, window_bounds = array<i64: 64, 8>}, {transform_indices = @transform_1, window_bounds = array<i64: 1, 64, 256>}, {transform_indices = @transform_2, window_bounds = array<i64: 1, 64, 256>}]} {
    %c0 = arith.constant 0 : index
    %c0_0 = arith.constant 0 : index
    %c0_1 = arith.constant 0 : index
    %0 = vector.load %arg2[%c0, %c0_0, %c0_1] : memref<1x64x256xf32, #tpu.memory_space<vmem>>, vector<1x64x256xf32>
    %cst = arith.constant dense<0.000000e+00> : vector<1x64xf32>
    %1 = vector.multi_reduction <add>, %0, %cst [2] : vector<1x64x256xf32> to vector<1x64xf32>
    %cst_2 = arith.constant 2.560000e+02 : f32
    %2 = vector.broadcast %cst_2 : f32 to vector<1x64xf32>
    %3 = arith.divf %1, %2 : vector<1x64xf32>
    %cst_3 = arith.constant dense<0xFF800000> : vector<1x64xf32>
    %4 = vector.multi_reduction <maximumf>, %0, %cst_3 [2] : vector<1x64x256xf32> to vector<1x64xf32>
    %c0_4 = arith.constant 0 : index
    %c0_5 = arith.constant 0 : index
    %5 = vector.load %arg1[%c0_4, %c0_5] : memref<64x8xf32, #tpu.memory_space<vmem>>, vector<64x4xf32>
    %c0_6 = arith.constant 0 : index
    %c4 = arith.constant 4 : index
    %6 = vector.load %arg1[%c0_6, %c4] : memref<64x8xf32, #tpu.memory_space<vmem>>, vector<64x4xf32>
    %7 = vector.shape_cast %5 : vector<64x4xf32> to vector<1x64x4xf32>
    %8 = vector.shape_cast %3 : vector<1x64xf32> to vector<1x64x1xf32>
    %9 = vector.broadcast %8 : vector<1x64x1xf32> to vector<1x64x4xf32>
    %10 = arith.mulf %7, %9 : vector<1x64x4xf32>
    %cst_7 = arith.constant dense<0.000000e+00> : vector<1x4xf32>
    %11 = vector.multi_reduction <add>, %10, %cst_7 [1] : vector<1x64x4xf32> to vector<1x4xf32>
    %cst_8 = arith.constant 0.000000e+00 : f32
    %12 = vector.broadcast %cst_8 : f32 to vector<1x4xf32>
    %13 = arith.maximumf %11, %12 : vector<1x4xf32>
    %14 = vector.shape_cast %5 : vector<64x4xf32> to vector<1x64x4xf32>
    %15 = vector.shape_cast %4 : vector<1x64xf32> to vector<1x64x1xf32>
    %16 = vector.broadcast %15 : vector<1x64x1xf32> to vector<1x64x4xf32>
    %17 = arith.mulf %14, %16 : vector<1x64x4xf32>
    %cst_9 = arith.constant dense<0.000000e+00> : vector<1x4xf32>
    %18 = vector.multi_reduction <add>, %17, %cst_9 [1] : vector<1x64x4xf32> to vector<1x4xf32>
    %cst_10 = arith.constant 0.000000e+00 : f32
    %19 = vector.broadcast %cst_10 : f32 to vector<1x4xf32>
    %20 = arith.maximumf %18, %19 : vector<1x4xf32>
    %21 = vector.shape_cast %6 : vector<64x4xf32> to vector<1x64x4xf32>
    %22 = arith.addf %13, %20 : vector<1x4xf32>
    %23 = vector.shape_cast %22 : vector<1x4xf32> to vector<1x1x4xf32>
    %24 = vector.broadcast %23 : vector<1x1x4xf32> to vector<1x64x4xf32>
    %25 = arith.mulf %21, %24 : vector<1x64x4xf32>
    %cst_11 = arith.constant dense<0.000000e+00> : vector<1x64xf32>
    %26 = vector.multi_reduction <add>, %25, %cst_11 [2] : vector<1x64x4xf32> to vector<1x64xf32>
    %27 = arith.negf %26 : vector<1x64xf32>
    %28 = math.exp %27 : vector<1x64xf32>
    %cst_12 = arith.constant 1.000000e+00 : f32
    %29 = vector.broadcast %cst_12 : f32 to vector<1x64xf32>
    %30 = arith.addf %29, %28 : vector<1x64xf32>
    %31 = arith.divf %29, %30 : vector<1x64xf32>
    %32 = vector.shape_cast %31 : vector<1x64xf32> to vector<1x64x1xf32>
    %33 = vector.broadcast %32 : vector<1x64x1xf32> to vector<1x64x256xf32>
    %34 = arith.mulf %0, %33 : vector<1x64x256xf32>
    %c0_13 = arith.constant 0 : index
    %c0_14 = arith.constant 0 : index
    %c0_15 = arith.constant 0 : index
    %35 = vector.load %arg3[%c0_13, %c0_14, %c0_15] : memref<1x64x256xf32, #tpu.memory_space<vmem>>, vector<1x64x256xf32>
    tpu.vector_store %arg3[%c0_13, %c0_14, %c0_15], %34 {strides = array<i32>} : memref<1x64x256xf32, #tpu.memory_space<vmem>>, vector<1x64x256xf32>,
    return
  }
  func.func @transform_0(%arg0: i32) -> (i32, i32) {
    %c0_i32 = arith.constant 0 : i32
    %c0_i32_0 = arith.constant 0 : i32
    %c0_i32_1 = arith.constant 0 : i32
    return %c0_i32, %c0_i32_0 : i32, i32
  }
  func.func @transform_1(%arg0: i32) -> (i32, i32, i32) {
    %c0_i32 = arith.constant 0 : i32
    %c0_i32_0 = arith.constant 0 : i32
    %c0_i32_1 = arith.constant 0 : i32
    return %arg0, %c0_i32, %c0_i32_0 : i32, i32, i32
  }
  func.func @transform_2(%arg0: i32) -> (i32, i32, i32) {
    %c0_i32 = arith.constant 0 : i32
    %c0_i32_0 = arith.constant 0 : i32
    %c0_i32_1 = arith.constant 0 : i32
    return %arg0, %c0_i32, %c0_i32_0 : i32, i32, i32
  }
}

</mosaic_0001>

<llo_original>
// kernel: tpu_custom_call.1
$region0: #{tpu_custom_call.1}
  #allocation0 [shape = 'u32[]', space=smem, size = 0x4, offset = 0x4, fixed_abs, tag = 'smem constant byte address 0x4 - core index']
  #allocation1 [shape = 'u32[144,128]{1,0:T(1,128)}', space=vmem, size = 0x12000, scoped, tag = 'internal scratch']
  %s0 = inlined_call_operand.vmem [shape: f32[64,8], index: 0, kind: input, shape index: {}]
  %s1 = inlined_call_operand.hbm [shape: f32[2,64,256], index: 1, kind: input, shape index: {}]
  %s2 = inlined_call_operand.hbm [shape: f32[2,64,256], index: 2, kind: output, shape index: {}]
  %s3 = sld [smem:[#allocation0]]
  $region45: #{tpu_custom_call.1} parent=0
    _
  %s5 = ssub.s32 1, %s3
  %s6 = scalar_select 0, %s5, %s3
  $region1: #{tpu_custom_call.1} parent=0
    #allocation2 [shape = 'u8[131072]{0}', space=vmem, size = 0x20000, scoped, tag = 'input window, operand 1']
    #allocation3 [shape = 's32[2]{0}', space=sflag, size = 0x8, scoped, tag = 'scoped memory for tpu_custom_call.1']
    #allocation4 [shape = 's32[2]{0}', space=sflag, size = 0x8, scoped, tag = 'scoped memory for tpu_custom_call.1']
    #allocation5 [shape = 'u8[131072]{0}', space=vmem, size = 0x20000, scoped, tag = 'output window, operand 0']
    %7 = vsyncpa [#allocation3], 0
    %s8 = scalar_lea.sflag [#allocation3], 1
    %9 = vsyncpa %s8, 0
    %10 = vsyncpa [#allocation4], 0
    %s11 = scalar_lea.sflag [#allocation4], 1
    %12 = vsyncpa %s11, 0
    loop: start=0, step=1, limit=4
    $region2: #{tpu_custom_call.1} parent=1 // loop_pre_header
      _
    $region3: #{tpu_custom_call.1} parent=1 // loop_header
      %s14 = sphi 0, %s18
      %p15 = scmp.ge.s32.totalorder %s14, 4
      %s22 = sphi 0, %s22
      %s24 = sphi 0, %s22
      %s25 = sphi 0, %s24
      %s39 = sphi 0, %s25
      %s45 = sphi 0, %s47
      %s48 = sphi 0, %s45
      %s49 = sphi 0, %s48
      %s65 = sphi 0, %s49
      %s71 = sphi 0, %s73
      %s74 = sphi 0, %s71
      %s75 = sphi 0, %s74
      %s91 = sphi 0, %s75
    $region4: #{tpu_custom_call.1} parent=1 // loop_header_branch
      %17 = sbr.rel (%p15) target = $region8
    $region5: #{tpu_custom_call.1} parent=1 // loop_body
      %s19 = ssub.s32 %s14, 1
      %s20 = ssub.s32 %s14, 2
      %s21 = sadd.s32 %s14, 1
      %s23 = sadd.s32 %s22, 1
      %p26 = scmp.eq.s32.totalorder %s14, 1
      %p27 = scmp.ne.s32.totalorder %s22, %s24
      %p28 = scmp.eq.s32.totalorder %s14, 0
      %p29 = por %p27, %p28
      %p30 = scmp.ne.s32.totalorder %s22, %s24
      %p31 = scmp.eq.s32.totalorder %s19, 1
      %p32 = por %p30, %p31
      %p33 = scmp.ne.s32.totalorder %s24, %s25
      %p34 = scmp.eq.s32.totalorder %s19, 0
      %p35 = por %p33, %p34
      %p36 = scmp.ne.s32.totalorder %s24, %s25
      %p37 = scmp.eq.s32.totalorder %s20, 1
      %p38 = por %p36, %p37
      %p40 = scmp.ne.s32.totalorder %s25, %s39
      %p41 = scmp.eq.s32.totalorder %s20, 0
      %p42 = por %p40, %p41
      %s43 = ssub.s32 %s14, %s21
      %p44 = scmp.eq.s32.totalorder %s43, 0
      %s46 = sadd.s32 %s45, 1
      %s47 = scalar_select %p44, %s45, %s46
      %p50 = pneg %p44
      %p51 = scmp.eq.s32.totalorder %s14, 1
      %p52 = por %p50, %p51
      %p53 = scmp.ne.s32.totalorder %s45, %s48
      %p54 = scmp.eq.s32.totalorder %s14, 0
      %p55 = por %p53, %p54
      %p56 = scmp.ne.s32.totalorder %s45, %s48
      %p57 = scmp.eq.s32.totalorder %s19, 1
      %p58 = por %p56, %p57
      %p59 = scmp.ne.s32.totalorder %s48, %s49
      %p60 = scmp.eq.s32.totalorder %s19, 0
      %p61 = por %p59, %p60
      %p62 = scmp.ne.s32.totalorder %s48, %s49
      %p63 = scmp.eq.s32.totalorder %s20, 1
      %p64 = por %p62, %p63
      %p66 = scmp.ne.s32.totalorder %s49, %s65
      %p67 = scmp.eq.s32.totalorder %s20, 0
      %p68 = por %p66, %p67
      %s69 = ssub.s32 %s14, %s21
      %p70 = scmp.eq.s32.totalorder %s69, 0
      %s72 = sadd.s32 %s71, 1
      %s73 = scalar_select %p70, %s71, %s72
      %p76 = pneg %p70
      %p77 = scmp.eq.s32.totalorder %s14, 1
      %p78 = por %p76, %p77
      %p79 = scmp.ne.s32.totalorder %s71, %s74
      %p80 = scmp.eq.s32.totalorder %s14, 0
      %p81 = por %p79, %p80
      %p82 = scmp.ne.s32.totalorder %s71, %s74
      %p83 = scmp.eq.s32.totalorder %s19, 1
      %p84 = por %p82, %p83
      %p85 = scmp.ne.s32.totalorder %s74, %s75
      %p86 = scmp.eq.s32.totalorder %s19, 0
      %p87 = por %p85, %p86
      %p88 = scmp.ne.s32.totalorder %s74, %s75
      %p89 = scmp.eq.s32.totalorder %s20, 1
      %p90 = por %p88, %p89
      %p92 = scmp.ne.s32.totalorder %s75, %s91
      %p93 = scmp.eq.s32.totalorder %s20, 0
      %p94 = por %p92, %p93
      %p95 = scmp.le.s32.totalorder 1, %s14
      %p96 = scmp.lt.s32.totalorder %s14, 3
      %p97 = pnand %p95, %p96
      %p98 = pneg %p97
      // Predicated region
      $region9: #{tpu_custom_call.1} parent=5 // pred_check
        _
      $region10: #{tpu_custom_call.1} parent=5 // pred_check_branch
        %100 = sbr.rel (%p97) target = $region12
      $region11: #{tpu_custom_call.1} parent=5 // pred_region
        %s101 = ssub.s32 %s14, 1
        // Predicated region
        $region13: #{tpu_custom_call.1} parent=11 // pred_check
          %p102 = pneg %p35
        $region14: #{tpu_custom_call.1} parent=11 // pred_check_branch
          %104 = sbr.rel (%p102) target = $region16
        $region15: #{tpu_custom_call.1} parent=11 // pred_region
          _
        $region16: #{tpu_custom_call.1} parent=11 // pred_fallthru
          _
      $region12: #{tpu_custom_call.1} parent=5 // pred_fallthru
        _
      %p105 = scmp.lt.s32.totalorder %s14, 2
      // Predicated region
      $region17: #{tpu_custom_call.1} parent=5 // pred_check
        %p106 = pneg %p105
      $region18: #{tpu_custom_call.1} parent=5 // pred_check_branch
        %108 = sbr.rel (%p106) target = $region20
      $region19: #{tpu_custom_call.1} parent=5 // pred_region
        // Predicated region
        $region21: #{tpu_custom_call.1} parent=19 // pred_check
          %p109 = pneg %p55
        $region22: #{tpu_custom_call.1} parent=19 // pred_check_branch
          %111 = sbr.rel (%p109) target = $region24
        $region23: #{tpu_custom_call.1} parent=19 // pred_region
          %s112 = sand.u32 %s45, 1
          %s113 = scalar_lea.sflag [#allocation3], %s112
          %s114 = sand.u32 %s45, 1
          %s115 = smul.addr %s114, 128
          %s116 = scalar_lea.vmem [#allocation2], %s115
          %s118 = ssub.s32 2048, 2048
          %119 = vsyncadd %s113, %s118
          %s120 = smul.addr %s14, 16
          %s121 = smul.addr %s120, 128
          %s122 = scalar_lea.hbm %s1, %s121
          %s123 = sshll.u32 %s116, 4
          %s124 = int_to_ptr.vmem [resolvable:$true] %s123
          %129 = dma.hbm_to_vmem [thread:$0]  %s122, 2048, %s124, %s113, 256, 256, 16
        $region24: #{tpu_custom_call.1} parent=19 // pred_fallthru
          _
      $region20: #{tpu_custom_call.1} parent=5 // pred_fallthru
        _
      %p130 = scmp.le.s32.totalorder 1, %s14
      %p131 = scmp.lt.s32.totalorder %s14, 3
      %p132 = pnand %p130, %p131
      %p133 = pneg %p132
      // Predicated region
      $region25: #{tpu_custom_call.1} parent=5 // pred_check
        _
      $region26: #{tpu_custom_call.1} parent=5 // pred_check_branch
        %135 = sbr.rel (%p132) target = $region28
      $region27: #{tpu_custom_call.1} parent=5 // pred_region
        %s136 = ssub.s32 %s14, 1
        %s137 = sand.u32 %s48, 1
        %s138 = scalar_lea.sflag [#allocation3], %s137
        %s139 = sand.u32 %s48, 1
        %s140 = smul.addr %s139, 128
        %s141 = scalar_lea.vmem [#allocation2], %s140
        // Predicated region
        $region29: #{tpu_custom_call.1} parent=27 // pred_check
          %p142 = pneg %p61
        $region30: #{tpu_custom_call.1} parent=27 // pred_check_branch
          %144 = sbr.rel (%p142) target = $region32
        $region31: #{tpu_custom_call.1} parent=27 // pred_region
          %145 = dma.done %s138, 2048
        $region32: #{tpu_custom_call.1} parent=27 // pred_fallthru
          _
        %p146 = pneg %p35
        %p147 = pneg %p32
        %s148 = sand.u32 %s48, 1
        %s149 = scalar_lea.sflag [#allocation3], %s148
        %s150 = sand.u32 %s48, 1
        %s151 = smul.addr %s150, 128
        %s152 = scalar_lea.vmem [#allocation2], %s151
        %p153 = pneg %p61
        %p154 = pneg %p58
        %p155 = pneg %p87
        %p156 = pneg %p84
        %s157 = sand.u32 %s74, 1
        %s158 = scalar_lea.sflag [#allocation4], %s157
        %s159 = sand.u32 %s74, 1
        %s160 = smul.addr %s159, 128
        %s161 = scalar_lea.vmem [#allocation5], %s160
        %v162 = vld [vmem:[%s141] sm:$0xff]
        %v163 = vld [vmem:[%s141 + $0x8] sm:$0xff]
        %v164 = vld [vmem:[%s141 + $0x10] sm:$0xff]
        %v165 = vld [vmem:[%s141 + $0x18] sm:$0xff]
        %v166 = vld [vmem:[%s141 + $0x20] sm:$0xff]
        %v167 = vld [vmem:[%s141 + $0x28] sm:$0xff]
        %v168 = vld [vmem:[%s141 + $0x30] sm:$0xff]
        %v169 = vld [vmem:[%s141 + $0x38] sm:$0xff]
        %v170 = vld [vmem:[%s141 + $0x40] sm:$0xff]
        %v171 = vld [vmem:[%s141 + $0x48] sm:$0xff]
        %v172 = vld [vmem:[%s141 + $0x50] sm:$0xff]
        %v173 = vld [vmem:[%s141 + $0x58] sm:$0xff]
        %v174 = vld [vmem:[%s141 + $0x60] sm:$0xff]
        %v175 = vld [vmem:[%s141 + $0x68] sm:$0xff]
        %v176 = vld [vmem:[%s141 + $0x70] sm:$0xff]
        %v177 = vld [vmem:[%s141 + $0x78] sm:$0xff]
        %v178 = vadd.f32 %v162, %v163
        %179 = vadd.xlane.f32.xlu0 %v178
        %v180 = vpop.xlane.xlu0 %179
        %v181 = vadd.f32 %v164, %v165
        %182 = vadd.xlane.f32.xlu0 %v181
        %v183 = vpop.xlane.xlu0 %182
        %v184 = vadd.f32 %v166, %v167
        %185 = vadd.xlane.f32.xlu0 %v184
        %v186 = vpop.xlane.xlu0 %185
        %v187 = vadd.f32 %v168, %v169
        %188 = vadd.xlane.f32.xlu0 %v187
        %v189 = vpop.xlane.xlu0 %188
        %v190 = vadd.f32 %v170, %v171
        %191 = vadd.xlane.f32.xlu0 %v190
        %v192 = vpop.xlane.xlu0 %191
        %v193 = vadd.f32 %v172, %v173
        %194 = vadd.xlane.f32.xlu0 %v193
        %v195 = vpop.xlane.xlu0 %194
        %v196 = vadd.f32 %v174, %v175
        %197 = vadd.xlane.f32.xlu0 %v196
        %v198 = vpop.xlane.xlu0 %197
        %v199 = vadd.f32 %v176, %v177
        %200 = vadd.xlane.f32.xlu0 %v199
        %v201 = vpop.xlane.xlu0 %200
        %v202 = vrcp.pop 256.0
        %v203 = vmul.f32 %v180, %v202
        %v204 = vmul.f32 %v183, %v202
        %v205 = vmul.f32 %v186, %v202
        %v206 = vmul.f32 %v189, %v202
        %v207 = vmul.f32 %v192, %v202
        %v208 = vmul.f32 %v195, %v202
        %v209 = vmul.f32 %v198, %v202
        %v210 = vmul.f32 %v201, %v202
        %v211 = vmax.f32 %v162, %v163
        %212 = vmax.xlane.f32.xlu0 %v211
        %v213 = vpop.xlane.xlu0 %212
        %v214 = vmax.f32 %v164, %v165
        %215 = vmax.xlane.f32.xlu0 %v214
        %v216 = vpop.xlane.xlu0 %215
        %v217 = vmax.f32 %v166, %v167
        %218 = vmax.xlane.f32.xlu0 %v217
        %v219 = vpop.xlane.xlu0 %218
        %v220 = vmax.f32 %v168, %v169
        %221 = vmax.xlane.f32.xlu0 %v220
        %v222 = vpop.xlane.xlu0 %221
        %v223 = vmax.f32 %v170, %v171
        %224 = vmax.xlane.f32.xlu0 %v223
        %v225 = vpop.xlane.xlu0 %224
        %v226 = vmax.f32 %v172, %v173
        %227 = vmax.xlane.f32.xlu0 %v226
        %v228 = vpop.xlane.xlu0 %227
        %v229 = vmax.f32 %v174, %v175
        %230 = vmax.xlane.f32.xlu0 %v229
        %v231 = vpop.xlane.xlu0 %230
        %v232 = vmax.f32 %v176, %v177
        %233 = vmax.xlane.f32.xlu0 %v232
        %v234 = vpop.xlane.xlu0 %233
        %v235 = vld [vmem:[%s0] sm:$0xff]
        %v236 = vld [vmem:[%s0 + $0x8] sm:$0xff]
        %v237 = vld [vmem:[%s0 + $0x10] sm:$0xff]
        %v238 = vld [vmem:[%s0 + $0x18] sm:$0xff]
        %v239 = vld [vmem:[%s0 + $0x20] sm:$0xff]
        %v240 = vld [vmem:[%s0 + $0x28] sm:$0xff]
        %v241 = vld [vmem:[%s0 + $0x30] sm:$0xff]
        %v242 = vld [vmem:[%s0 + $0x38] sm:$0xff]
        %v243 = vmul.f32 %v235, %v203
        %v244 = vmul.f32 %v236, %v204
        %v245 = vmul.f32 %v237, %v205
        %v246 = vmul.f32 %v238, %v206
        %v247 = vmul.f32 %v239, %v207
        %v248 = vmul.f32 %v240, %v208
        %v249 = vmul.f32 %v241, %v209
        %v250 = vmul.f32 %v242, %v210
        %vm251 = vcmask 31744
        %v252 = vsel %vm251, %v243, 0.0
        %v253 = vsel %vm251, %v244, 0.0
        %v254 = vadd.f32 %v252, %v253
        %v255 = vsel %vm251, %v245, 0.0
        %v256 = vadd.f32 %v254, %v255
        %v257 = vsel %vm251, %v246, 0.0
        %v258 = vadd.f32 %v256, %v257
        %v259 = vsel %vm251, %v247, 0.0
        %v260 = vadd.f32 %v258, %v259
        %v261 = vsel %vm251, %v248, 0.0
        %v262 = vadd.f32 %v260, %v261
        %v263 = vsel %vm251, %v249, 0.0
        %v264 = vadd.f32 %v262, %v263
        %v265 = vsel %vm251, %v250, 0.0
        %v266 = vadd.f32 %v264, %v265
        %v267 = vrot.slane %v266, 4
        %v268 = vadd.f32 %v266, %v267
        %v269 = vrot.slane %v268, 2
        %v270 = vadd.f32 %v268, %v269
        %v271 = vrot.slane %v270, 1
        %v272 = vadd.f32 %v270, %v271
        %v273 = vmax.f32 %v272, 0.0
        %v274 = vmul.f32 %v235, %v213
        %v275 = vmul.f32 %v236, %v216
        %v276 = vmul.f32 %v237, %v219
        %v277 = vmul.f32 %v238, %v222
        %v278 = vmul.f32 %v239, %v225
        %v279 = vmul.f32 %v240, %v228
        %v280 = vmul.f32 %v241, %v231
        %v281 = vmul.f32 %v242, %v234
        %v282 = vsel %vm251, %v274, 0.0
        %v283 = vsel %vm251, %v275, 0.0
        %v284 = vadd.f32 %v282, %v283
        %v285 = vsel %vm251, %v276, 0.0
        %v286 = vadd.f32 %v284, %v285
        %v287 = vsel %vm251, %v277, 0.0
        %v288 = vadd.f32 %v286, %v287
        %v289 = vsel %vm251, %v278, 0.0
        %v290 = vadd.f32 %v288, %v289
        %v291 = vsel %vm251, %v279, 0.0
        %v292 = vadd.f32 %v290, %v291
        %v293 = vsel %vm251, %v280, 0.0
        %v294 = vadd.f32 %v292, %v293
        %v295 = vsel %vm251, %v281, 0.0
        %v296 = vadd.f32 %v294, %v295
        %v297 = vrot.slane %v296, 4
        %v298 = vadd.f32 %v296, %v297
        %v299 = vrot.slane %v298, 2
        %v300 = vadd.f32 %v298, %v299
        %v301 = vrot.slane %v300, 1
        %v302 = vadd.f32 %v300, %v301
        %v303 = vmax.f32 %v302, 0.0
        %v304 = vadd.f32 %v273, %v303
        %306 = vrot.lane.b32.xlu0 %v304, 4
        %v307 = vpop.permute.xlu0 %306
        %v309 = vmul.f32 %v235, %v307
        %v310 = vmul.f32 %v236, %v307
        %v311 = vmul.f32 %v237, %v307
        %v312 = vmul.f32 %v238, %v307
        %v313 = vmul.f32 %v239, %v307
        %v314 = vmul.f32 %v240, %v307
        %v315 = vmul.f32 %v241, %v307
        %v316 = vmul.f32 %v242, %v307
        %325 = vrot.lane.b32.xlu0 %v309, 124
        %v326 = vpop.permute.xlu0 %325
        %327 = vrot.lane.b32.xlu0 %v310, 124
        %v328 = vpop.permute.xlu0 %327
        %329 = vrot.lane.b32.xlu0 %v311, 124
        %v330 = vpop.permute.xlu0 %329
        %331 = vrot.lane.b32.xlu0 %v312, 124
        %v332 = vpop.permute.xlu0 %331
        %333 = vrot.lane.b32.xlu0 %v313, 124
        %v334 = vpop.permute.xlu0 %333
        %335 = vrot.lane.b32.xlu0 %v314, 124
        %v336 = vpop.permute.xlu0 %335
        %337 = vrot.lane.b32.xlu0 %v315, 124
        %v338 = vpop.permute.xlu0 %337
        %339 = vrot.lane.b32.xlu0 %v316, 124
        %v340 = vpop.permute.xlu0 %339
        %v349 = vsel %vm251, %v326, 0.0
        %350 = vadd.xlane.f32.xlu0 %v349
        %v351 = vpop.xlane.xlu0 %350
        %v352 = vsel %vm251, %v328, 0.0
        %353 = vadd.xlane.f32.xlu0 %v352
        %v354 = vpop.xlane.xlu0 %353
        %v355 = vsel %vm251, %v330, 0.0
        %356 = vadd.xlane.f32.xlu0 %v355
        %v357 = vpop.xlane.xlu0 %356
        %v358 = vsel %vm251, %v332, 0.0
        %359 = vadd.xlane.f32.xlu0 %v358
        %v360 = vpop.xlane.xlu0 %359
        %v361 = vsel %vm251, %v334, 0.0
        %362 = vadd.xlane.f32.xlu0 %v361
        %v363 = vpop.xlane.xlu0 %362
        %v364 = vsel %vm251, %v336, 0.0
        %365 = vadd.xlane.f32.xlu0 %v364
        %v366 = vpop.xlane.xlu0 %365
        %v367 = vsel %vm251, %v338, 0.0
        %368 = vadd.xlane.f32.xlu0 %v367
        %v369 = vpop.xlane.xlu0 %368
        %v370 = vsel %vm251, %v340, 0.0
        %371 = vadd.xlane.f32.xlu0 %v370
        %v372 = vpop.xlane.xlu0 %371
        %v373 = vxor.u32 %v351, 2147483648
        %v374 = vxor.u32 %v354, 2147483648
        %v375 = vxor.u32 %v357, 2147483648
        %v376 = vxor.u32 %v360, 2147483648
        %v377 = vxor.u32 %v363, 2147483648
        %v378 = vxor.u32 %v366, 2147483648
        %v379 = vxor.u32 %v369, 2147483648
        %v380 = vxor.u32 %v372, 2147483648
        %v381 = vmul.f32 %v373, 1.442695
        %v382 = vpow.pop %v381
        %v383 = vmul.f32 %v374, 1.442695
        %v384 = vpow.pop %v383
        %v385 = vmul.f32 %v375, 1.442695
        %v386 = vpow.pop %v385
        %v387 = vmul.f32 %v376, 1.442695
        %v388 = vpow.pop %v387
        %v389 = vmul.f32 %v377, 1.442695
        %v390 = vpow.pop %v389
        %v391 = vmul.f32 %v378, 1.442695
        %v392 = vpow.pop %v391
        %v393 = vmul.f32 %v379, 1.442695
        %v394 = vpow.pop %v393
        %v395 = vmul.f32 %v380, 1.442695
        %v396 = vpow.pop %v395
        %v397 = vadd.f32 %v382, 1.0
        %v398 = vadd.f32 %v384, 1.0
        %v399 = vadd.f32 %v386, 1.0
        %v400 = vadd.f32 %v388, 1.0
        %v401 = vadd.f32 %v390, 1.0
        %v402 = vadd.f32 %v392, 1.0
        %v403 = vadd.f32 %v394, 1.0
        %v404 = vadd.f32 %v396, 1.0
        %v405 = vrcp.pop %v397
        %v406 = vmul.f32 1.0, %v405
        %v407 = vrcp.pop %v398
        %v408 = vmul.f32 1.0, %v407
        %v409 = vrcp.pop %v399
        %v410 = vmul.f32 1.0, %v409
        %v411 = vrcp.pop %v400
        %v412 = vmul.f32 1.0, %v411
        %v413 = vrcp.pop %v401
        %v414 = vmul.f32 1.0, %v413
        %v415 = vrcp.pop %v402
        %v416 = vmul.f32 1.0, %v415
        %v417 = vrcp.pop %v403
        %v418 = vmul.f32 1.0, %v417
        %v419 = vrcp.pop %v404
        %v420 = vmul.f32 1.0, %v419
        %v421 = vmul.f32 %v162, %v406
        %v422 = vmul.f32 %v163, %v406
        %v423 = vmul.f32 %v164, %v408
        %v424 = vmul.f32 %v165, %v408
        %v425 = vmul.f32 %v166, %v410
        %v426 = vmul.f32 %v167, %v410
        %v427 = vmul.f32 %v168, %v412
        %v428 = vmul.f32 %v169, %v412
        %v429 = vmul.f32 %v170, %v414
        %v430 = vmul.f32 %v171, %v414
        %v431 = vmul.f32 %v172, %v416
        %v432 = vmul.f32 %v173, %v416
        %v433 = vmul.f32 %v174, %v418
        %v434 = vmul.f32 %v175, %v418
        %v435 = vmul.f32 %v176, %v420
        %v436 = vmul.f32 %v177, %v420
        %437 = vst [vmem:[%s161] sm:$0xff] %v421
        %438 = vst [vmem:[%s161 + $0x8] sm:$0xff] %v422
        %439 = vst [vmem:[%s161 + $0x10] sm:$0xff] %v423
        %440 = vst [vmem:[%s161 + $0x18] sm:$0xff] %v424
        %441 = vst [vmem:[%s161 + $0x20] sm:$0xff] %v425
        %442 = vst [vmem:[%s161 + $0x28] sm:$0xff] %v426
        %443 = vst [vmem:[%s161 + $0x30] sm:$0xff] %v427
        %444 = vst [vmem:[%s161 + $0x38] sm:$0xff] %v428
        %445 = vst [vmem:[%s161 + $0x40] sm:$0xff] %v429
        %446 = vst [vmem:[%s161 + $0x48] sm:$0xff] %v430
        %447 = vst [vmem:[%s161 + $0x50] sm:$0xff] %v431
        %448 = vst [vmem:[%s161 + $0x58] sm:$0xff] %v432
        %449 = vst [vmem:[%s161 + $0x60] sm:$0xff] %v433
        %450 = vst [vmem:[%s161 + $0x68] sm:$0xff] %v434
        %451 = vst [vmem:[%s161 + $0x70] sm:$0xff] %v435
        %452 = vst [vmem:[%s161 + $0x78] sm:$0xff] %v436
        %s453 = sand.u32 %s74, 1
        %s454 = scalar_lea.sflag [#allocation4], %s453
        %s455 = sand.u32 %s74, 1
        %s456 = smul.addr %s455, 128
        %s457 = scalar_lea.vmem [#allocation5], %s456
        // Predicated region
        $region33: #{tpu_custom_call.1} parent=27 // pred_check
          %p458 = pneg %p84
        $region34: #{tpu_custom_call.1} parent=27 // pred_check_branch
          %460 = sbr.rel (%p458) target = $region36
        $region35: #{tpu_custom_call.1} parent=27 // pred_region
          %s462 = ssub.s32 2048, 2048
          %463 = vsyncadd %s454, %s462
          %s464 = smul.addr %s19, 16
          %s465 = smul.addr %s464, 128
          %s466 = scalar_lea.hbm %s2, %s465
          %s467 = sshll.u32 %s457, 4
          %s468 = int_to_ptr.vmem [resolvable:$true] %s467
          %473 = dma.vmem_to_hbm [thread:$0]  %s468, 2048, %s466, %s454, 256, 256, 16
        $region36: #{tpu_custom_call.1} parent=27 // pred_fallthru
          _
      $region28: #{tpu_custom_call.1} parent=5 // pred_fallthru
        _
      %p474 = scmp.le.s32.totalorder 2, %s14
      // Predicated region
      $region37: #{tpu_custom_call.1} parent=5 // pred_check
        %p475 = pneg %p474
      $region38: #{tpu_custom_call.1} parent=5 // pred_check_branch
        %477 = sbr.rel (%p475) target = $region40
      $region39: #{tpu_custom_call.1} parent=5 // pred_region
        %s478 = ssub.s32 %s14, 2
        // Predicated region
        $region41: #{tpu_custom_call.1} parent=39 // pred_check
          %p479 = pneg %p90
        $region42: #{tpu_custom_call.1} parent=39 // pred_check_branch
          %481 = sbr.rel (%p479) target = $region44
        $region43: #{tpu_custom_call.1} parent=39 // pred_region
          %s482 = sand.u32 %s75, 1
          %s483 = scalar_lea.sflag [#allocation4], %s482
          %s484 = sand.u32 %s75, 1
          %s485 = smul.addr %s484, 128
          %s486 = scalar_lea.vmem [#allocation5], %s485
          %487 = dma.done %s483, 2048
        $region44: #{tpu_custom_call.1} parent=39 // pred_fallthru
          _
      $region40: #{tpu_custom_call.1} parent=5 // pred_fallthru
        _
    $region6: #{tpu_custom_call.1} parent=1 // loop_footer
      %s18 = sadd.s32 1, %s14
    $region7: #{tpu_custom_call.1} parent=1 // loop_footer_branch
      %13 = sbr.rel target = $region3
    $region8: #{tpu_custom_call.1} parent=1 // loop_exit
      _
    %488 = vsyncpa [#allocation3], 1
    %s489 = scalar_lea.sflag [#allocation3], 1
    %490 = vsyncpa %s489, 1
    %491 = vsyncpa [#allocation4], 1
    %s492 = scalar_lea.sflag [#allocation4], 1
    %493 = vsyncpa %s492, 1

</llo_original>
